<compile_context>
chip_gen: v7x
topology: tpu7x:2x2x1
jax: 0.10.0
libtpu: 0.0.40
codegen_flags: <defaults>
</compile_context>

<pallas_src>
import functools

import jax
import jax.numpy as jnp
from jax import lax
from jax.experimental import pallas as pl
from jax.experimental.pallas import tpu as pltpu

EPS = 1e-5
DEPTH = 2
N_INTERNAL = 2 ** DEPTH - 1          # 3 internal nodes
N_LEAVES = 2 ** DEPTH                # 4 leaves


# ----------------------------- Pallas kernel -------------------------------- #
def forest_kernel(split_ref, x_ref, thr_ref, leaf_ref, out_ref, *,
                  n_trees, depth, bs):
    """One grid step = one (batch, L-tile); processes every tree.

    split_ref : SMEM int32 (n_trees * n_internal * bs,)       split feature idx
    x_ref     : VMEM f32   (1, D, TL)    features on sublanes, sequence on lanes
    thr_ref   : VMEM f32   (1, 1, n_trees * n_internal)       split thresholds
    leaf_ref  : VMEM f32   (1, C, n_trees * n_leaves)         leaf labels
    out_ref   : VMEM f32   (1, C, TL)
    """
    n_internal = 2 ** depth - 1
    n_leaves = 2 ** depth
    b = pl.program_id(0)
    D, TL = x_ref.shape[1], x_ref.shape[2]
    C = out_ref.shape[1]
    inv_n = 1.0 / n_trees                       # fold forest mean into leaves

    xv = x_ref[0]                                               # (D, TL)
    dim_iota = lax.broadcasted_iota(jnp.int32, (D, 1), 0)       # hoisted

    acc = jnp.zeros((C, TL), jnp.float32)
    for t in range(n_trees):                                    # static unroll
        # -- internal-node decisions; `status` ends as the leaf memberships --
        status = [None]                                         # None == ones
        for node in range(n_internal):
            t_status = status.pop(0)
            k_node = t * n_internal + node
            fidx = split_ref[k_node * bs + b]                   # int32 scalar
            thr = thr_ref[0, :, pl.ds(k_node, 1)]               # (1, 1)
            sel = (dim_iota == fidx).astype(jnp.float32)        # (D, 1) one-hot
            row = jnp.sum(xv * sel, axis=0, keepdims=True) + EPS    # (1, TL)
            raw = (row < thr).astype(jnp.float32)               # (1, TL)
            if t_status is None:
                dec, other = raw, 1.0 - raw
            else:
                dec = raw * t_status
                other = t_status - dec      # == t_status * (1 - raw), 0/1 vals
            status.append(dec)
            status.append(other)

        # -- leaf combine: decisions are exact 0/1, so the surviving `status`
        #    entries are exactly the per-leaf path products, in leaf order --
        for li in range(n_leaves):
            fdec = status[li]                                   # (1, TL)
            lcol = leaf_ref[0, :, pl.ds(t * n_leaves + li, 1)]  # (C, 1)
            acc = acc + (lcol * inv_n) * fdec                   # (C, TL)

    out_ref[0] = acc                        # single lane-dense full-block store
    # TODO(synk): hard=True branch (per-tree argmax + one_hot) not implemented;
    # the module's default hard=False path is reproduced exactly.


def forest_predict(x, split_idx, thresholds, leaf_labels, *, depth=DEPTH):
    """x: (bs, L, D) f32; split_idx: (n_trees, n_internal, bs) int;
    thresholds: (n_trees, n_internal, bs) f32;
    leaf_labels: (n_trees, n_leaves, bs, C) f32.  Returns (bs, L, C) f32."""
    n_trees, n_internal, bs_p = split_idx.shape
    n_leaves = leaf_labels.shape[1]
    C = leaf_labels.shape[-1]
    bs, L, D = x.shape
    assert bs == bs_p and n_internal == 2 ** depth - 1 and n_leaves == 2 ** depth

    # Lane-dense relayout (long axis last): features -> sublanes, seq -> lanes.
    x_t = jnp.transpose(x.astype(jnp.float32), (0, 2, 1))           # (bs, D, L)
    thr_t = jnp.transpose(thresholds.astype(jnp.float32), (2, 0, 1)
                          ).reshape(bs, 1, n_trees * n_internal)
    leaf_t = jnp.transpose(leaf_labels.astype(jnp.float32), (2, 3, 0, 1)
                           ).reshape(bs, C, n_trees * n_leaves)
    split_flat = split_idx.astype(jnp.int32).reshape(-1)            # SMEM table

    # Largest lane tile that divides L (whole L if it is already small).
    tl = next((t for t in (512, 256, 128) if L % t == 0), L)
    grid = (bs, L // tl)

    kernel = functools.partial(forest_kernel, n_trees=n_trees, depth=depth, bs=bs)
    out_t = pl.pallas_call(
        kernel,
        out_shape=jax.ShapeDtypeStruct((bs, C, L), jnp.float32),
        grid_spec=pltpu.PrefetchScalarGridSpec(
            num_scalar_prefetch=1,                 # split indices -> SMEM
            grid=grid,
            in_specs=[
                pl.BlockSpec((1, D, tl), lambda b, l, *_: (b, 0, l)),
                pl.BlockSpec((1, 1, n_trees * n_internal),
                             lambda b, l, *_: (b, 0, 0)),
                pl.BlockSpec((1, C, n_trees * n_leaves),
                             lambda b, l, *_: (b, 0, 0)),
            ],
            out_specs=pl.BlockSpec((1, C, tl), lambda b, l, *_: (b, 0, l)),
        ),
        compiler_params=pltpu.CompilerParams(
            dimension_semantics=("parallel", "parallel")),   # megacore on v7x
    )(split_flat, x_t, thr_t, leaf_t)

    return jnp.transpose(out_t, (0, 2, 1))                           # (bs, L, C)


# -------------------------- plain-JAX glue / reference ----------------------- #
def _find_parent(idx):
    return (idx - 1) // 2


def _find_path(idx):
    if idx == 0:
        return []
    return [idx] + _find_path((idx - 1) // 2)


def _compute_decisions(x, split_idx, thr):
    """x: (bs, L, D); split_idx: (n_internal, bs) int; thr: (n_internal, bs)."""
    bs, L, D = x.shape
    xeps = x + EPS
    status = [jnp.ones((bs, L), jnp.float32)]
    decs = []
    for ctr in range(split_idx.shape[0]):
        ts = status.pop(0)
        oh = jax.nn.one_hot(split_idx[ctr], D, dtype=jnp.float32)    # (bs, D)
        tx = jnp.sum(xeps * oh[:, None, :], axis=-1)                 # (bs, L)
        dec = (tx < thr[ctr][:, None]).astype(jnp.float32) * ts
        decs.append(dec)
        status.append(ts * dec)
        status.append(ts * (1.0 - dec))
    return decs


def _leaf_decision(decs, tree_ctr, bs, L):
    fd = jnp.ones((bs, L), jnp.float32)
    for idx in _find_path(tree_ctr):
        p = _find_parent(idx)
        fd = fd * decs[p] if idx % 2 == 1 else fd * (1.0 - decs[p])
    return fd


def build_tree(train_x, train_y, auto_dims, auto_thresholds, depth=DEPTH):
    """Mirrors DecisionTree._build_tree; returns (split_idx, thr, leaf_labels)."""
    bs, L, D = train_x.shape
    n_internal = 2 ** depth - 1
    split_idx = jnp.stack(
        [jnp.argmax(auto_dims[c], axis=-1) for c in range(n_internal)]
    ).astype(jnp.int32)                                        # (n_internal, bs)
    thr = jnp.stack([auto_thresholds[c][:, 0] for c in range(n_internal)])
    decs = _compute_decisions(train_x, split_idx, thr)
    leaves = []
    for tree_ctr in range(2 ** depth - 1, 2 ** (depth + 1) - 1):
        fd = _leaf_decision(decs, tree_ctr, bs, L)[..., None]          # (bs, L, 1)
        node = (train_y * fd).sum(axis=1) / (fd.sum(axis=1) + EPS)     # (bs, C)
        leaves.append(node)
    return split_idx, thr, jnp.stack(leaves)                   # (n_leaves, bs, C)


def reference_predict(x, split_idx, thresholds, leaf_labels):
    """Plain-JAX replica of DecisionTreeForest.predict(hard=False)."""
    bs, L, _ = x.shape
    C = leaf_labels.shape[-1]
    n_trees = split_idx.shape[0]
    total = jnp.zeros((bs, L, C), jnp.float32)
    for t in range(n_trees):
        decs = _compute_decisions(x, split_idx[t], thresholds[t])
        for tree_ctr in range(2 ** DEPTH - 1, 2 ** (DEPTH + 1) - 1):
            fd = _leaf_decision(decs, tree_ctr, bs, L)
            total = total + fd[:, :, None] * leaf_labels[
                t, tree_ctr - 2 ** DEPTH + 1][:, None, :]
    return total / n_trees


# ---------------------------------- main ------------------------------------ #
if __name__ == "__main__":
    key = jax.random.PRNGKey(0)
    bs, L, D, C = 2, 128, 16, 4     # batch, seq_len (lane-dense), feat dim, out dim
    n_trees = 3

    k_x, k_tree = jax.random.split(key)
    x = jax.random.normal(k_x, (bs, L, D), dtype=jnp.float32)

    # Build each tree deterministically (init-time glue, mirrors DecisionTree.__init__).
    si_list, th_list, lf_list = [], [], []
    for t in range(n_trees):
        kt = jax.random.fold_in(k_tree, t)
        kt_x, kt_y, kt_d, kt_t = jax.random.split(kt, 4)
        train_x = jax.random.normal(kt_x, (bs, L, D), dtype=jnp.float32)
        train_y = jax.random.normal(kt_y, (bs, L, C), dtype=jnp.float32)
        auto_dims = [jax.random.normal(jax.random.fold_in(kt_d, c), (bs, D),
                                       dtype=jnp.float32) for c in range(N_INTERNAL)]
        auto_thrs = [jax.random.normal(jax.random.fold_in(kt_t, c), (bs, 1),
                                       dtype=jnp.float32) for c in range(N_INTERNAL)]
        si, th, lf = build_tree(train_x, train_y, auto_dims, auto_thrs)
        si_list.append(si); th_list.append(th); lf_list.append(lf)

    split_idx = jnp.stack(si_list)        # (n_trees, 3, bs) int32
    thresholds = jnp.stack(th_list)       # (n_trees, 3, bs) f32
    leaf_labels = jnp.stack(lf_list)      # (n_trees, 4, bs, C) f32

    out = forest_predict(x, split_idx, thresholds, leaf_labels)
    out = jax.block_until_ready(out)

    ref = reference_predict(x, split_idx, thresholds, leaf_labels)
    assert out.shape == (bs, L, C)
    assert jnp.allclose(out, ref, atol=1e-5, rtol=1e-5)

    print("KERNEL_OK")
</pallas_src>

<mosaic_0001>
module attributes {stable_mosaic.version = 11 : i64} {
  func.func @forest_kernel(%arg0: i32, %arg1: i32, %arg2: memref<18xi32, #tpu.memory_space<smem>>, %arg3: memref<1x16x128xf32, #tpu.memory_space<vmem>>, %arg4: memref<1x1x9xf32, #tpu.memory_space<vmem>>, %arg5: memref<1x4x12xf32, #tpu.memory_space<vmem>>, %arg6: memref<1x4x128xf32, #tpu.memory_space<vmem>>) attributes {dimension_semantics = [#tpu.dimension_semantics<parallel>, #tpu.dimension_semantics<parallel>], iteration_bounds = array<i64: 2, 1>, scalar_prefetch = 1 : i64, scratch_operands = 0 : i64, tpu.core_type = #tpu.core_type<tc>, window_params = [{transform_indices = @transform_0, window_bounds = array<i64: 1, 16, 128>}, {transform_indices = @transform_1, window_bounds = array<i64: 1, 1, 9>}, {transform_indices = @transform_2, window_bounds = array<i64: 1, 4, 12>}, {transform_indices = @transform_3, window_bounds = array<i64: 1, 4, 128>}]} {
    %c0 = arith.constant 0 : index
    %c0_0 = arith.constant 0 : index
    %c0_1 = arith.constant 0 : index
    %0 = vector.load %arg3[%c0, %c0_0, %c0_1] : memref<1x16x128xf32, #tpu.memory_space<vmem>>, vector<1x16x128xf32>
    %1 = vector.shape_cast %0 : vector<1x16x128xf32> to vector<16x128xf32>
    %2 = tpu.iota {dimensions = array<i32: 0>} : vector<16x1xi32>
    %cst = arith.constant 0.000000e+00 : f32
    %3 = vector.broadcast %cst : f32 to vector<4x128xf32>
    %c0_i32 = arith.constant 0 : i32
    %4 = arith.addi %c0_i32, %arg0 : i32
    %5 = arith.index_cast %4 : i32 to index
    %6 = memref.load %arg2[%5] : memref<18xi32, #tpu.memory_space<smem>>
    %c0_2 = arith.constant 0 : index
    %c0_3 = arith.constant 0 : index
    %c0_4 = arith.constant 0 : index
    %7 = vector.load %arg4[%c0_2, %c0_3, %c0_4] : memref<1x1x9xf32, #tpu.memory_space<vmem>>, vector<1x1x1xf32>
    %8 = vector.shape_cast %7 : vector<1x1x1xf32> to vector<1x1xf32>
    %9 = vector.broadcast %6 : i32 to vector<16x1xi32>
    %10 = arith.cmpi eq, %2, %9 : vector<16x1xi32>
    %11 = arith.extui %10 : vector<16x1xi1> to vector<16x1xi32>
    %12 = arith.sitofp %11 : vector<16x1xi32> to vector<16x1xf32>
    %13 = vector.broadcast %12 : vector<16x1xf32> to vector<16x128xf32>
    %14 = arith.mulf %1, %13 : vector<16x128xf32>
    %cst_5 = arith.constant dense<0.000000e+00> : vector<128xf32>
    %15 = vector.multi_reduction <add>, %14, %cst_5 [0] : vector<16x128xf32> to vector<128xf32>
    %16 = vector.shape_cast %15 : vector<128xf32> to vector<1x128xf32>
    %cst_6 = arith.constant 9.99999974E-6 : f32
    %17 = vector.broadcast %cst_6 : f32 to vector<1x128xf32>
    %18 = arith.addf %16, %17 : vector<1x128xf32>
    %19 = vector.broadcast %8 : vector<1x1xf32> to vector<1x128xf32>
    %20 = arith.cmpf olt, %18, %19 : vector<1x128xf32>
    %21 = arith.extui %20 : vector<1x128xi1> to vector<1x128xi32>
    %22 = arith.sitofp %21 : vector<1x128xi32> to vector<1x128xf32>
    %cst_7 = arith.constant 1.000000e+00 : f32
    %23 = vector.broadcast %cst_7 : f32 to vector<1x128xf32>
    %24 = arith.subf %23, %22 : vector<1x128xf32>
    %c2_i32 = arith.constant 2 : i32
    %25 = arith.addi %c2_i32, %arg0 : i32
    %26 = arith.index_cast %25 : i32 to index
    %27 = memref.load %arg2[%26] : memref<18xi32, #tpu.memory_space<smem>>
    %c0_8 = arith.constant 0 : index
    %c0_9 = arith.constant 0 : index
    %c1 = arith.constant 1 : index
    %28 = vector.load %arg4[%c0_8, %c0_9, %c1] : memref<1x1x9xf32, #tpu.memory_space<vmem>>, vector<1x1x1xf32>
    %29 = vector.shape_cast %28 : vector<1x1x1xf32> to vector<1x1xf32>
    %30 = vector.broadcast %27 : i32 to vector<16x1xi32>
    %31 = arith.cmpi eq, %2, %30 : vector<16x1xi32>
    %32 = arith.extui %31 : vector<16x1xi1> to vector<16x1xi32>
    %33 = arith.sitofp %32 : vector<16x1xi32> to vector<16x1xf32>
    %34 = vector.broadcast %33 : vector<16x1xf32> to vector<16x128xf32>
    %35 = arith.mulf %1, %34 : vector<16x128xf32>
    %cst_10 = arith.constant dense<0.000000e+00> : vector<128xf32>
    %36 = vector.multi_reduction <add>, %35, %cst_10 [0] : vector<16x128xf32> to vector<128xf32>
    %37 = vector.shape_cast %36 : vector<128xf32> to vector<1x128xf32>
    %cst_11 = arith.constant 9.99999974E-6 : f32
    %38 = vector.broadcast %cst_11 : f32 to vector<1x128xf32>
    %39 = arith.addf %37, %38 : vector<1x128xf32>
    %40 = vector.broadcast %29 : vector<1x1xf32> to vector<1x128xf32>
    %41 = arith.cmpf olt, %39, %40 : vector<1x128xf32>
    %42 = arith.extui %41 : vector<1x128xi1> to vector<1x128xi32>
    %43 = arith.sitofp %42 : vector<1x128xi32> to vector<1x128xf32>
    %44 = arith.mulf %43, %22 : vector<1x128xf32>
    %45 = arith.subf %22, %44 : vector<1x128xf32>
    %c4_i32 = arith.constant 4 : i32
    %46 = arith.addi %c4_i32, %arg0 : i32
    %47 = arith.index_cast %46 : i32 to index
    %48 = memref.load %arg2[%47] : memref<18xi32, #tpu.memory_space<smem>>
    %c0_12 = arith.constant 0 : index
    %c0_13 = arith.constant 0 : index
    %c2 = arith.constant 2 : index
    %49 = vector.load %arg4[%c0_12, %c0_13, %c2] : memref<1x1x9xf32, #tpu.memory_space<vmem>>, vector<1x1x1xf32>
    %50 = vector.shape_cast %49 : vector<1x1x1xf32> to vector<1x1xf32>
    %51 = vector.broadcast %48 : i32 to vector<16x1xi32>
    %52 = arith.cmpi eq, %2, %51 : vector<16x1xi32>
    %53 = arith.extui %52 : vector<16x1xi1> to vector<16x1xi32>
    %54 = arith.sitofp %53 : vector<16x1xi32> to vector<16x1xf32>
    %55 = vector.broadcast %54 : vector<16x1xf32> to vector<16x128xf32>
    %56 = arith.mulf %1, %55 : vector<16x128xf32>
    %cst_14 = arith.constant dense<0.000000e+00> : vector<128xf32>
    %57 = vector.multi_reduction <add>, %56, %cst_14 [0] : vector<16x128xf32> to vector<128xf32>
    %58 = vector.shape_cast %57 : vector<128xf32> to vector<1x128xf32>
    %cst_15 = arith.constant 9.99999974E-6 : f32
    %59 = vector.broadcast %cst_15 : f32 to vector<1x128xf32>
    %60 = arith.addf %58, %59 : vector<1x128xf32>
    %61 = vector.broadcast %50 : vector<1x1xf32> to vector<1x128xf32>
    %62 = arith.cmpf olt, %60, %61 : vector<1x128xf32>
    %63 = arith.extui %62 : vector<1x128xi1> to vector<1x128xi32>
    %64 = arith.sitofp %63 : vector<1x128xi32> to vector<1x128xf32>
    %65 = arith.mulf %64, %24 : vector<1x128xf32>
    %66 = arith.subf %24, %65 : vector<1x128xf32>
    %c0_16 = arith.constant 0 : index
    %c0_17 = arith.constant 0 : index
    %c0_18 = arith.constant 0 : index
    %67 = vector.load %arg5[%c0_16, %c0_17, %c0_18] : memref<1x4x12xf32, #tpu.memory_space<vmem>>, vector<1x4x1xf32>
    %68 = vector.shape_cast %67 : vector<1x4x1xf32> to vector<4x1xf32>
    %cst_19 = arith.constant 0.333333343 : f32
    %69 = vector.broadcast %cst_19 : f32 to vector<4x1xf32>
    %70 = arith.mulf %68, %69 : vector<4x1xf32>
    %71 = vector.broadcast %70 : vector<4x1xf32> to vector<4x128xf32>
    %72 = vector.broadcast %44 : vector<1x128xf32> to vector<4x128xf32>
    %73 = arith.mulf %71, %72 : vector<4x128xf32>
    %74 = arith.addf %3, %73 : vector<4x128xf32>
    %c0_20 = arith.constant 0 : index
    %c0_21 = arith.constant 0 : index
    %c1_22 = arith.constant 1 : index
    %75 = vector.load %arg5[%c0_20, %c0_21, %c1_22] : memref<1x4x12xf32, #tpu.memory_space<vmem>>, vector<1x4x1xf32>
    %76 = vector.shape_cast %75 : vector<1x4x1xf32> to vector<4x1xf32>
    %cst_23 = arith.constant 0.333333343 : f32
    %77 = vector.broadcast %cst_23 : f32 to vector<4x1xf32>
    %78 = arith.mulf %76, %77 : vector<4x1xf32>
    %79 = vector.broadcast %78 : vector<4x1xf32> to vector<4x128xf32>
    %80 = vector.broadcast %45 : vector<1x128xf32> to vector<4x128xf32>
    %81 = arith.mulf %79, %80 : vector<4x128xf32>
    %82 = arith.addf %74, %81 : vector<4x128xf32>
    %c0_24 = arith.constant 0 : index
    %c0_25 = arith.constant 0 : index
    %c2_26 = arith.constant 2 : index
    %83 = vector.load %arg5[%c0_24, %c0_25, %c2_26] : memref<1x4x12xf32, #tpu.memory_space<vmem>>, vector<1x4x1xf32>
    %84 = vector.shape_cast %83 : vector<1x4x1xf32> to vector<4x1xf32>
    %cst_27 = arith.constant 0.333333343 : f32
    %85 = vector.broadcast %cst_27 : f32 to vector<4x1xf32>
    %86 = arith.mulf %84, %85 : vector<4x1xf32>
    %87 = vector.broadcast %86 : vector<4x1xf32> to vector<4x128xf32>
    %88 = vector.broadcast %65 : vector<1x128xf32> to vector<4x128xf32>
    %89 = arith.mulf %87, %88 : vector<4x128xf32>
    %90 = arith.addf %82, %89 : vector<4x128xf32>
    %c0_28 = arith.constant 0 : index
    %c0_29 = arith.constant 0 : index
    %c3 = arith.constant 3 : index
    %91 = vector.load %arg5[%c0_28, %c0_29, %c3] : memref<1x4x12xf32, #tpu.memory_space<vmem>>, vector<1x4x1xf32>
    %92 = vector.shape_cast %91 : vector<1x4x1xf32> to vector<4x1xf32>
    %cst_30 = arith.constant 0.333333343 : f32
    %93 = vector.broadcast %cst_30 : f32 to vector<4x1xf32>
    %94 = arith.mulf %92, %93 : vector<4x1xf32>
    %95 = vector.broadcast %94 : vector<4x1xf32> to vector<4x128xf32>
    %96 = vector.broadcast %66 : vector<1x128xf32> to vector<4x128xf32>
    %97 = arith.mulf %95, %96 : vector<4x128xf32>
    %98 = arith.addf %90, %97 : vector<4x128xf32>
    %c6_i32 = arith.constant 6 : i32
    %99 = arith.addi %c6_i32, %arg0 : i32
    %100 = arith.index_cast %99 : i32 to index
    %101 = memref.load %arg2[%100] : memref<18xi32, #tpu.memory_space<smem>>
    %c0_31 = arith.constant 0 : index
    %c0_32 = arith.constant 0 : index
    %c3_33 = arith.constant 3 : index
    %102 = vector.load %arg4[%c0_31, %c0_32, %c3_33] : memref<1x1x9xf32, #tpu.memory_space<vmem>>, vector<1x1x1xf32>
    %103 = vector.shape_cast %102 : vector<1x1x1xf32> to vector<1x1xf32>
    %104 = vector.broadcast %101 : i32 to vector<16x1xi32>
    %105 = arith.cmpi eq, %2, %104 : vector<16x1xi32>
    %106 = arith.extui %105 : vector<16x1xi1> to vector<16x1xi32>
    %107 = arith.sitofp %106 : vector<16x1xi32> to vector<16x1xf32>
    %108 = vector.broadcast %107 : vector<16x1xf32> to vector<16x128xf32>
    %109 = arith.mulf %1, %108 : vector<16x128xf32>
    %cst_34 = arith.constant dense<0.000000e+00> : vector<128xf32>
    %110 = vector.multi_reduction <add>, %109, %cst_34 [0] : vector<16x128xf32> to vector<128xf32>
    %111 = vector.shape_cast %110 : vector<128xf32> to vector<1x128xf32>
    %cst_35 = arith.constant 9.99999974E-6 : f32
    %112 = vector.broadcast %cst_35 : f32 to vector<1x128xf32>
    %113 = arith.addf %111, %112 : vector<1x128xf32>
    %114 = vector.broadcast %103 : vector<1x1xf32> to vector<1x128xf32>
    %115 = arith.cmpf olt, %113, %114 : vector<1x128xf32>
    %116 = arith.extui %115 : vector<1x128xi1> to vector<1x128xi32>
    %117 = arith.sitofp %116 : vector<1x128xi32> to vector<1x128xf32>
    %cst_36 = arith.constant 1.000000e+00 : f32
    %118 = vector.broadcast %cst_36 : f32 to vector<1x128xf32>
    %119 = arith.subf %118, %117 : vector<1x128xf32>
    %c8_i32 = arith.constant 8 : i32
    %120 = arith.addi %c8_i32, %arg0 : i32
    %121 = arith.index_cast %120 : i32 to index
    %122 = memref.load %arg2[%121] : memref<18xi32, #tpu.memory_space<smem>>
    %c0_37 = arith.constant 0 : index
    %c0_38 = arith.constant 0 : index
    %c4 = arith.constant 4 : index
    %123 = vector.load %arg4[%c0_37, %c0_38, %c4] : memref<1x1x9xf32, #tpu.memory_space<vmem>>, vector<1x1x1xf32>
    %124 = vector.shape_cast %123 : vector<1x1x1xf32> to vector<1x1xf32>
    %125 = vector.broadcast %122 : i32 to vector<16x1xi32>
    %126 = arith.cmpi eq, %2, %125 : vector<16x1xi32>
    %127 = arith.extui %126 : vector<16x1xi1> to vector<16x1xi32>
    %128 = arith.sitofp %127 : vector<16x1xi32> to vector<16x1xf32>
    %129 = vector.broadcast %128 : vector<16x1xf32> to vector<16x128xf32>
    %130 = arith.mulf %1, %129 : vector<16x128xf32>
    %cst_39 = arith.constant dense<0.000000e+00> : vector<128xf32>
    %131 = vector.multi_reduction <add>, %130, %cst_39 [0] : vector<16x128xf32> to vector<128xf32>
    %132 = vector.shape_cast %131 : vector<128xf32> to vector<1x128xf32>
    %cst_40 = arith.constant 9.99999974E-6 : f32
    %133 = vector.broadcast %cst_40 : f32 to vector<1x128xf32>
    %134 = arith.addf %132, %133 : vector<1x128xf32>
    %135 = vector.broadcast %124 : vector<1x1xf32> to vector<1x128xf32>
    %136 = arith.cmpf olt, %134, %135 : vector<1x128xf32>
    %137 = arith.extui %136 : vector<1x128xi1> to vector<1x128xi32>
    %138 = arith.sitofp %137 : vector<1x128xi32> to vector<1x128xf32>
    %139 = arith.mulf %138, %117 : vector<1x128xf32>
    %140 = arith.subf %117, %139 : vector<1x128xf32>
    %c10_i32 = arith.constant 10 : i32
    %141 = arith.addi %c10_i32, %arg0 : i32
    %142 = arith.index_cast %141 : i32 to index
    %143 = memref.load %arg2[%142] : memref<18xi32, #tpu.memory_space<smem>>
    %c0_41 = arith.constant 0 : index
    %c0_42 = arith.constant 0 : index
    %c5 = arith.constant 5 : index
    %144 = vector.load %arg4[%c0_41, %c0_42, %c5] : memref<1x1x9xf32, #tpu.memory_space<vmem>>, vector<1x1x1xf32>
    %145 = vector.shape_cast %144 : vector<1x1x1xf32> to vector<1x1xf32>
    %146 = vector.broadcast %143 : i32 to vector<16x1xi32>
    %147 = arith.cmpi eq, %2, %146 : vector<16x1xi32>
    %148 = arith.extui %147 : vector<16x1xi1> to vector<16x1xi32>
    %149 = arith.sitofp %148 : vector<16x1xi32> to vector<16x1xf32>
    %150 = vector.broadcast %149 : vector<16x1xf32> to vector<16x128xf32>
    %151 = arith.mulf %1, %150 : vector<16x128xf32>
    %cst_43 = arith.constant dense<0.000000e+00> : vector<128xf32>
    %152 = vector.multi_reduction <add>, %151, %cst_43 [0] : vector<16x128xf32> to vector<128xf32>
    %153 = vector.shape_cast %152 : vector<128xf32> to vector<1x128xf32>
    %cst_44 = arith.constant 9.99999974E-6 : f32
    %154 = vector.broadcast %cst_44 : f32 to vector<1x128xf32>
    %155 = arith.addf %153, %154 : vector<1x128xf32>
    %156 = vector.broadcast %145 : vector<1x1xf32> to vector<1x128xf32>
    %157 = arith.cmpf olt, %155, %156 : vector<1x128xf32>
    %158 = arith.extui %157 : vector<1x128xi1> to vector<1x128xi32>
    %159 = arith.sitofp %158 : vector<1x128xi32> to vector<1x128xf32>
    %160 = arith.mulf %159, %119 : vector<1x128xf32>
    %161 = arith.subf %119, %160 : vector<1x128xf32>
    %c0_45 = arith.constant 0 : index
    %c0_46 = arith.constant 0 : index
    %c4_47 = arith.constant 4 : index
    %162 = vector.load %arg5[%c0_45, %c0_46, %c4_47] : memref<1x4x12xf32, #tpu.memory_space<vmem>>, vector<1x4x1xf32>
    %163 = vector.shape_cast %162 : vector<1x4x1xf32> to vector<4x1xf32>
    %cst_48 = arith.constant 0.333333343 : f32
    %164 = vector.broadcast %cst_48 : f32 to vector<4x1xf32>
    %165 = arith.mulf %163, %164 : vector<4x1xf32>
    %166 = vector.broadcast %165 : vector<4x1xf32> to vector<4x128xf32>
    %167 = vector.broadcast %139 : vector<1x128xf32> to vector<4x128xf32>
    %168 = arith.mulf %166, %167 : vector<4x128xf32>
    %169 = arith.addf %98, %168 : vector<4x128xf32>
    %c0_49 = arith.constant 0 : index
    %c0_50 = arith.constant 0 : index
    %c5_51 = arith.constant 5 : index
    %170 = vector.load %arg5[%c0_49, %c0_50, %c5_51] : memref<1x4x12xf32, #tpu.memory_space<vmem>>, vector<1x4x1xf32>
    %171 = vector.shape_cast %170 : vector<1x4x1xf32> to vector<4x1xf32>
    %cst_52 = arith.constant 0.333333343 : f32
    %172 = vector.broadcast %cst_52 : f32 to vector<4x1xf32>
    %173 = arith.mulf %171, %172 : vector<4x1xf32>
    %174 = vector.broadcast %173 : vector<4x1xf32> to vector<4x128xf32>
    %175 = vector.broadcast %140 : vector<1x128xf32> to vector<4x128xf32>
    %176 = arith.mulf %174, %175 : vector<4x128xf32>
    %177 = arith.addf %169, %176 : vector<4x128xf32>
    %c0_53 = arith.constant 0 : index
    %c0_54 = arith.constant 0 : index
    %c6 = arith.constant 6 : index
    %178 = vector.load %arg5[%c0_53, %c0_54, %c6] : memref<1x4x12xf32, #tpu.memory_space<vmem>>, vector<1x4x1xf32>
    %179 = vector.shape_cast %178 : vector<1x4x1xf32> to vector<4x1xf32>
    %cst_55 = arith.constant 0.333333343 : f32
    %180 = vector.broadcast %cst_55 : f32 to vector<4x1xf32>
    %181 = arith.mulf %179, %180 : vector<4x1xf32>
    %182 = vector.broadcast %181 : vector<4x1xf32> to vector<4x128xf32>
    %183 = vector.broadcast %160 : vector<1x128xf32> to vector<4x128xf32>
    %184 = arith.mulf %182, %183 : vector<4x128xf32>
    %185 = arith.addf %177, %184 : vector<4x128xf32>
    %c0_56 = arith.constant 0 : index
    %c0_57 = arith.constant 0 : index
    %c7 = arith.constant 7 : index
    %186 = vector.load %arg5[%c0_56, %c0_57, %c7] : memref<1x4x12xf32, #tpu.memory_space<vmem>>, vector<1x4x1xf32>
    %187 = vector.shape_cast %186 : vector<1x4x1xf32> to vector<4x1xf32>
    %cst_58 = arith.constant 0.333333343 : f32
    %188 = vector.broadcast %cst_58 : f32 to vector<4x1xf32>
    %189 = arith.mulf %187, %188 : vector<4x1xf32>
    %190 = vector.broadcast %189 : vector<4x1xf32> to vector<4x128xf32>
    %191 = vector.broadcast %161 : vector<1x128xf32> to vector<4x128xf32>
    %192 = arith.mulf %190, %191 : vector<4x128xf32>
    %193 = arith.addf %185, %192 : vector<4x128xf32>
    %c12_i32 = arith.constant 12 : i32
    %194 = arith.addi %c12_i32, %arg0 : i32
    %195 = arith.index_cast %194 : i32 to index
    %196 = memref.load %arg2[%195] : memref<18xi32, #tpu.memory_space<smem>>
    %c0_59 = arith.constant 0 : index
    %c0_60 = arith.constant 0 : index
    %c6_61 = arith.constant 6 : index
    %197 = vector.load %arg4[%c0_59, %c0_60, %c6_61] : memref<1x1x9xf32, #tpu.memory_space<vmem>>, vector<1x1x1xf32>
    %198 = vector.shape_cast %197 : vector<1x1x1xf32> to vector<1x1xf32>
    %199 = vector.broadcast %196 : i32 to vector<16x1xi32>
    %200 = arith.cmpi eq, %2, %199 : vector<16x1xi32>
    %201 = arith.extui %200 : vector<16x1xi1> to vector<16x1xi32>
    %202 = arith.sitofp %201 : vector<16x1xi32> to vector<16x1xf32>
    %203 = vector.broadcast %202 : vector<16x1xf32> to vector<16x128xf32>
    %204 = arith.mulf %1, %203 : vector<16x128xf32>
    %cst_62 = arith.constant dense<0.000000e+00> : vector<128xf32>
    %205 = vector.multi_reduction <add>, %204, %cst_62 [0] : vector<16x128xf32> to vector<128xf32>
    %206 = vector.shape_cast %205 : vector<128xf32> to vector<1x128xf32>
    %cst_63 = arith.constant 9.99999974E-6 : f32
    %207 = vector.broadcast %cst_63 : f32 to vector<1x128xf32>
    %208 = arith.addf %206, %207 : vector<1x128xf32>
    %209 = vector.broadcast %198 : vector<1x1xf32> to vector<1x128xf32>
    %210 = arith.cmpf olt, %208, %209 : vector<1x128xf32>
    %211 = arith.extui %210 : vector<1x128xi1> to vector<1x128xi32>
    %212 = arith.sitofp %211 : vector<1x128xi32> to vector<1x128xf32>
    %cst_64 = arith.constant 1.000000e+00 : f32
    %213 = vector.broadcast %cst_64 : f32 to vector<1x128xf32>
    %214 = arith.subf %213, %212 : vector<1x128xf32>
    %c14_i32 = arith.constant 14 : i32
    %215 = arith.addi %c14_i32, %arg0 : i32
    %216 = arith.index_cast %215 : i32 to index
    %217 = memref.load %arg2[%216] : memref<18xi32, #tpu.memory_space<smem>>
    %c0_65 = arith.constant 0 : index
    %c0_66 = arith.constant 0 : index
    %c7_67 = arith.constant 7 : index
    %218 = vector.load %arg4[%c0_65, %c0_66, %c7_67] : memref<1x1x9xf32, #tpu.memory_space<vmem>>, vector<1x1x1xf32>
    %219 = vector.shape_cast %218 : vector<1x1x1xf32> to vector<1x1xf32>
    %220 = vector.broadcast %217 : i32 to vector<16x1xi32>
    %221 = arith.cmpi eq, %2, %220 : vector<16x1xi32>
    %222 = arith.extui %221 : vector<16x1xi1> to vector<16x1xi32>
    %223 = arith.sitofp %222 : vector<16x1xi32> to vector<16x1xf32>
    %224 = vector.broadcast %223 : vector<16x1xf32> to vector<16x128xf32>
    %225 = arith.mulf %1, %224 : vector<16x128xf32>
    %cst_68 = arith.constant dense<0.000000e+00> : vector<128xf32>
    %226 = vector.multi_reduction <add>, %225, %cst_68 [0] : vector<16x128xf32> to vector<128xf32>
    %227 = vector.shape_cast %226 : vector<128xf32> to vector<1x128xf32>
    %cst_69 = arith.constant 9.99999974E-6 : f32
    %228 = vector.broadcast %cst_69 : f32 to vector<1x128xf32>
    %229 = arith.addf %227, %228 : vector<1x128xf32>
    %230 = vector.broadcast %219 : vector<1x1xf32> to vector<1x128xf32>
    %231 = arith.cmpf olt, %229, %230 : vector<1x128xf32>
    %232 = arith.extui %231 : vector<1x128xi1> to vector<1x128xi32>
    %233 = arith.sitofp %232 : vector<1x128xi32> to vector<1x128xf32>
    %234 = arith.mulf %233, %212 : vector<1x128xf32>
    %235 = arith.subf %212, %234 : vector<1x128xf32>
    %c16_i32 = arith.constant 16 : i32
    %236 = arith.addi %c16_i32, %arg0 : i32
    %237 = arith.index_cast %236 : i32 to index
    %238 = memref.load %arg2[%237] : memref<18xi32, #tpu.memory_space<smem>>
    %c0_70 = arith.constant 0 : index
    %c0_71 = arith.constant 0 : index
    %c8 = arith.constant 8 : index
    %239 = vector.load %arg4[%c0_70, %c0_71, %c8] : memref<1x1x9xf32, #tpu.memory_space<vmem>>, vector<1x1x1xf32>
    %240 = vector.shape_cast %239 : vector<1x1x1xf32> to vector<1x1xf32>
    %241 = vector.broadcast %238 : i32 to vector<16x1xi32>
    %242 = arith.cmpi eq, %2, %241 : vector<16x1xi32>
    %243 = arith.extui %242 : vector<16x1xi1> to vector<16x1xi32>
    %244 = arith.sitofp %243 : vector<16x1xi32> to vector<16x1xf32>
    %245 = vector.broadcast %244 : vector<16x1xf32> to vector<16x128xf32>
    %246 = arith.mulf %1, %245 : vector<16x128xf32>
    %cst_72 = arith.constant dense<0.000000e+00> : vector<128xf32>
    %247 = vector.multi_reduction <add>, %246, %cst_72 [0] : vector<16x128xf32> to vector<128xf32>
    %248 = vector.shape_cast %247 : vector<128xf32> to vector<1x128xf32>
    %cst_73 = arith.constant 9.99999974E-6 : f32
    %249 = vector.broadcast %cst_73 : f32 to vector<1x128xf32>
    %250 = arith.addf %248, %249 : vector<1x128xf32>
    %251 = vector.broadcast %240 : vector<1x1xf32> to vector<1x128xf32>
    %252 = arith.cmpf olt, %250, %251 : vector<1x128xf32>
    %253 = arith.extui %252 : vector<1x128xi1> to vector<1x128xi32>
    %254 = arith.sitofp %253 : vector<1x128xi32> to vector<1x128xf32>
    %255 = arith.mulf %254, %214 : vector<1x128xf32>
    %256 = arith.subf %214, %255 : vector<1x128xf32>
    %c0_74 = arith.constant 0 : index
    %c0_75 = arith.constant 0 : index
    %c8_76 = arith.constant 8 : index
    %257 = vector.load %arg5[%c0_74, %c0_75, %c8_76] : memref<1x4x12xf32, #tpu.memory_space<vmem>>, vector<1x4x1xf32>
    %258 = vector.shape_cast %257 : vector<1x4x1xf32> to vector<4x1xf32>
    %cst_77 = arith.constant 0.333333343 : f32
    %259 = vector.broadcast %cst_77 : f32 to vector<4x1xf32>
    %260 = arith.mulf %258, %259 : vector<4x1xf32>
    %261 = vector.broadcast %260 : vector<4x1xf32> to vector<4x128xf32>
    %262 = vector.broadcast %234 : vector<1x128xf32> to vector<4x128xf32>
    %263 = arith.mulf %261, %262 : vector<4x128xf32>
    %264 = arith.addf %193, %263 : vector<4x128xf32>
    %c0_78 = arith.constant 0 : index
    %c0_79 = arith.constant 0 : index
    %c9 = arith.constant 9 : index
    %265 = vector.load %arg5[%c0_78, %c0_79, %c9] : memref<1x4x12xf32, #tpu.memory_space<vmem>>, vector<1x4x1xf32>
    %266 = vector.shape_cast %265 : vector<1x4x1xf32> to vector<4x1xf32>
    %cst_80 = arith.constant 0.333333343 : f32
    %267 = vector.broadcast %cst_80 : f32 to vector<4x1xf32>
    %268 = arith.mulf %266, %267 : vector<4x1xf32>
    %269 = vector.broadcast %268 : vector<4x1xf32> to vector<4x128xf32>
    %270 = vector.broadcast %235 : vector<1x128xf32> to vector<4x128xf32>
    %271 = arith.mulf %269, %270 : vector<4x128xf32>
    %272 = arith.addf %264, %271 : vector<4x128xf32>
    %c0_81 = arith.constant 0 : index
    %c0_82 = arith.constant 0 : index
    %c10 = arith.constant 10 : index
    %273 = vector.load %arg5[%c0_81, %c0_82, %c10] : memref<1x4x12xf32, #tpu.memory_space<vmem>>, vector<1x4x1xf32>
    %274 = vector.shape_cast %273 : vector<1x4x1xf32> to vector<4x1xf32>
    %cst_83 = arith.constant 0.333333343 : f32
    %275 = vector.broadcast %cst_83 : f32 to vector<4x1xf32>
    %276 = arith.mulf %274, %275 : vector<4x1xf32>
    %277 = vector.broadcast %276 : vector<4x1xf32> to vector<4x128xf32>
    %278 = vector.broadcast %255 : vector<1x128xf32> to vector<4x128xf32>
    %279 = arith.mulf %277, %278 : vector<4x128xf32>
    %280 = arith.addf %272, %279 : vector<4x128xf32>
    %c0_84 = arith.constant 0 : index
    %c0_85 = arith.constant 0 : index
    %c11 = arith.constant 11 : index
    %281 = vector.load %arg5[%c0_84, %c0_85, %c11] : memref<1x4x12xf32, #tpu.memory_space<vmem>>, vector<1x4x1xf32>
    %282 = vector.shape_cast %281 : vector<1x4x1xf32> to vector<4x1xf32>
    %cst_86 = arith.constant 0.333333343 : f32
    %283 = vector.broadcast %cst_86 : f32 to vector<4x1xf32>
    %284 = arith.mulf %282, %283 : vector<4x1xf32>
    %285 = vector.broadcast %284 : vector<4x1xf32> to vector<4x128xf32>
    %286 = vector.broadcast %256 : vector<1x128xf32> to vector<4x128xf32>
    %287 = arith.mulf %285, %286 : vector<4x128xf32>
    %288 = arith.addf %280, %287 : vector<4x128xf32>
    %c0_87 = arith.constant 0 : index
    %c0_88 = arith.constant 0 : index
    %c0_89 = arith.constant 0 : index
    %289 = vector.load %arg6[%c0_87, %c0_88, %c0_89] : memref<1x4x128xf32, #tpu.memory_space<vmem>>, vector<1x4x128xf32>
    %290 = vector.shape_cast %289 : vector<1x4x128xf32> to vector<4x128xf32>
    %291 = vector.shape_cast %288 : vector<4x128xf32> to vector<1x4x128xf32>
    tpu.vector_store %arg6[%c0_87, %c0_88, %c0_89], %291 {strides = array<i32>} : memref<1x4x128xf32, #tpu.memory_space<vmem>>, vector<1x4x128xf32>,
    return
  }
  func.func @transform_0(%arg0: i32, %arg1: i32, %arg2: memref<18xi32, #tpu.memory_space<smem>>) -> (i32, i32, i32) {
    %c0_i32 = arith.constant 0 : i32
    %c0_i32_0 = arith.constant 0 : i32
    return %arg0, %c0_i32, %arg1 : i32, i32, i32
  }
  func.func @transform_1(%arg0: i32, %arg1: i32, %arg2: memref<18xi32, #tpu.memory_space<smem>>) -> (i32, i32, i32) {
    %c0_i32 = arith.constant 0 : i32
    %c0_i32_0 = arith.constant 0 : i32
    %c0_i32_1 = arith.constant 0 : i32
    return %arg0, %c0_i32, %c0_i32_0 : i32, i32, i32
  }
  func.func @transform_2(%arg0: i32, %arg1: i32, %arg2: memref<18xi32, #tpu.memory_space<smem>>) -> (i32, i32, i32) {
    %c0_i32 = arith.constant 0 : i32
    %c0_i32_0 = arith.constant 0 : i32
    %c0_i32_1 = arith.constant 0 : i32
    return %arg0, %c0_i32, %c0_i32_0 : i32, i32, i32
  }
  func.func @transform_3(%arg0: i32, %arg1: i32, %arg2: memref<18xi32, #tpu.memory_space<smem>>) -> (i32, i32, i32) {
    %c0_i32 = arith.constant 0 : i32
    %c0_i32_0 = arith.constant 0 : i32
    return %arg0, %c0_i32, %arg1 : i32, i32, i32
  }
}

</mosaic_0001>

<llo_original>
// kernel: tpu_custom_call.1
$region0: #{tpu_custom_call.1}
  #allocation0 [shape = 'u32[]', space=smem, size = 0x4, offset = 0x4, fixed_abs, tag = 'smem constant byte address 0x4 - core index']
  #allocation1 [shape = 'u32[144,128]{1,0:T(1,128)}', space=vmem, size = 0x12000, scoped, tag = 'internal scratch']
  #allocation2 [shape = 's32[1]{0}', space=sflag, size = 0x4, scoped, tag = 'scoped memory for tpu_custom_call.1']
  #allocation3 [shape = 'u8[512]{0}', space=smem, size = 0x200, scoped, tag = 'prefetched SMEM operand 0']
  %s0 = inlined_call_operand.hbm [shape: s32[18], index: 0, kind: input, shape index: {}]
  %s1 = inlined_call_operand.hbm [shape: f32[2,16,128], index: 1, kind: input, shape index: {}]
  %s2 = inlined_call_operand.vmem [shape: f32[2,1,9], index: 2, kind: input, shape index: {}]
  %s3 = inlined_call_operand.vmem [shape: f32[2,4,12], index: 3, kind: input, shape index: {}]
  %s4 = inlined_call_operand.hbm [shape: f32[2,4,128], index: 4, kind: output, shape index: {}]
  %s5 = sld [smem:[#allocation0]]
  $region49: #{tpu_custom_call.1} parent=0
    _
  %s7 = ssub.s32 1, %s5
  %s8 = scalar_select 0, %s7, %s5
  %10 = dma.hbm_to_smem %s0, 16, [#allocation3], [#allocation2]
  %11 = dma.done [#allocation2], 16
  %12 = sfence
  $region1: #{tpu_custom_call.1} parent=0
    #allocation4 [shape = 'u8[16384]{0}', space=vmem, size = 0x4000, scoped, tag = 'input window, operand 1']
    #allocation5 [shape = 's32[2]{0}', space=sflag, size = 0x8, scoped, tag = 'scoped memory for tpu_custom_call.1']
    #allocation6 [shape = 's32[2]{0}', space=sflag, size = 0x8, scoped, tag = 'scoped memory for tpu_custom_call.1']
    #allocation7 [shape = 'u8[4096]{0}', space=vmem, size = 0x1000, scoped, tag = 'output window, operand 0']
    %13 = vsyncpa [#allocation5], 0
    %s14 = scalar_lea.sflag [#allocation5], 1
    %15 = vsyncpa %s14, 0
    %16 = vsyncpa [#allocation6], 0
    %s17 = scalar_lea.sflag [#allocation6], 1
    %18 = vsyncpa %s17, 0
    loop: start=0, step=1, limit=4
    $region2: #{tpu_custom_call.1} parent=1 // loop_pre_header
      _
    $region3: #{tpu_custom_call.1} parent=1 // loop_header
      %s20 = sphi 0, %s24
      %p21 = scmp.ge.s32.totalorder %s20, 4
      %s27 = sphi 0, %s39
      %s28 = sphi 0, %s35
      %s29 = sphi 0, %s27
      %s30 = sphi 0, %s28
      %s31 = sphi 0, %s29
      %s32 = sphi 0, %s30
      %s44 = sphi 0, %s46
      %s47 = sphi 0, %s44
      %s48 = sphi 0, %s47
      %s64 = sphi 0, %s48
      %s70 = sphi 0, %s72
      %s73 = sphi 0, %s70
      %s74 = sphi 0, %s73
      %s90 = sphi 0, %s74
      %s96 = sphi 0, %s98
      %s99 = sphi 0, %s96
      %s100 = sphi 0, %s99
      %s116 = sphi 0, %s100
      %s124 = sphi 0, %s126
      %s127 = sphi 0, %s124
      %s128 = sphi 0, %s127
      %s144 = sphi 0, %s128
    $region4: #{tpu_custom_call.1} parent=1 // loop_header_branch
      %23 = sbr.rel (%p21) target = $region8
    $region5: #{tpu_custom_call.1} parent=1 // loop_body
      %s25 = ssub.s32 %s20, 1
      %s26 = ssub.s32 %s20, 2
      %s33 = sadd.s32 1, %s28
      %p34 = scmp.ge.s32.totalorder %s33, 1
      %s35 = scalar_select %p34, 0, %s33
      %s36 = sadd.s32 1, %s27
      %s37 = scalar_select %p34, %s36, %s27
      %p38 = scmp.ge.s32.totalorder %s37, 2
      %s39 = scalar_select %p38, 0, %s37
      %s40 = ssub.s32 %s27, %s39
      %s41 = ssub.s32 %s28, %s35
      %s42 = sor.u32 %s40, %s41
      %p43 = scmp.eq.s32.totalorder %s42, 0
      %s45 = sadd.s32 %s44, 1
      %s46 = scalar_select %p43, %s44, %s45
      %p49 = pneg %p43
      %p50 = scmp.eq.s32.totalorder %s20, 1
      %p51 = por %p49, %p50
      %p52 = scmp.ne.s32.totalorder %s44, %s47
      %p53 = scmp.eq.s32.totalorder %s20, 0
      %p54 = por %p52, %p53
      %p55 = scmp.ne.s32.totalorder %s44, %s47
      %p56 = scmp.eq.s32.totalorder %s25, 1
      %p57 = por %p55, %p56
      %p58 = scmp.ne.s32.totalorder %s47, %s48
      %p59 = scmp.eq.s32.totalorder %s25, 0
      %p60 = por %p58, %p59
      %p61 = scmp.ne.s32.totalorder %s47, %s48
      %p62 = scmp.eq.s32.totalorder %s26, 1
      %p63 = por %p61, %p62
      %p65 = scmp.ne.s32.totalorder %s48, %s64
      %p66 = scmp.eq.s32.totalorder %s26, 0
      %p67 = por %p65, %p66
      %s68 = ssub.s32 %s27, %s39
      %p69 = scmp.eq.s32.totalorder %s68, 0
      %s71 = sadd.s32 %s70, 1
      %s72 = scalar_select %p69, %s70, %s71
      %p75 = pneg %p69
      %p76 = scmp.eq.s32.totalorder %s20, 1
      %p77 = por %p75, %p76
      %p78 = scmp.ne.s32.totalorder %s70, %s73
      %p79 = scmp.eq.s32.totalorder %s20, 0
      %p80 = por %p78, %p79
      %p81 = scmp.ne.s32.totalorder %s70, %s73
      %p82 = scmp.eq.s32.totalorder %s25, 1
      %p83 = por %p81, %p82
      %p84 = scmp.ne.s32.totalorder %s73, %s74
      %p85 = scmp.eq.s32.totalorder %s25, 0
      %p86 = por %p84, %p85
      %p87 = scmp.ne.s32.totalorder %s73, %s74
      %p88 = scmp.eq.s32.totalorder %s26, 1
      %p89 = por %p87, %p88
      %p91 = scmp.ne.s32.totalorder %s74, %s90
      %p92 = scmp.eq.s32.totalorder %s26, 0
      %p93 = por %p91, %p92
      %s94 = ssub.s32 %s27, %s39
      %p95 = scmp.eq.s32.totalorder %s94, 0
      %s97 = sadd.s32 %s96, 1
      %s98 = scalar_select %p95, %s96, %s97
      %p101 = pneg %p95
      %p102 = scmp.eq.s32.totalorder %s20, 1
      %p103 = por %p101, %p102
      %p104 = scmp.ne.s32.totalorder %s96, %s99
      %p105 = scmp.eq.s32.totalorder %s20, 0
      %p106 = por %p104, %p105
      %p107 = scmp.ne.s32.totalorder %s96, %s99
      %p108 = scmp.eq.s32.totalorder %s25, 1
      %p109 = por %p107, %p108
      %p110 = scmp.ne.s32.totalorder %s99, %s100
      %p111 = scmp.eq.s32.totalorder %s25, 0
      %p112 = por %p110, %p111
      %p113 = scmp.ne.s32.totalorder %s99, %s100
      %p114 = scmp.eq.s32.totalorder %s26, 1
      %p115 = por %p113, %p114
      %p117 = scmp.ne.s32.totalorder %s100, %s116
      %p118 = scmp.eq.s32.totalorder %s26, 0
      %p119 = por %p117, %p118
      %s120 = ssub.s32 %s27, %s39
      %s121 = ssub.s32 %s28, %s35
      %s122 = sor.u32 %s120, %s121
      %p123 = scmp.eq.s32.totalorder %s122, 0
      %s125 = sadd.s32 %s124, 1
      %s126 = scalar_select %p123, %s124, %s125
      %p129 = pneg %p123
      %p130 = scmp.eq.s32.totalorder %s20, 1
      %p131 = por %p129, %p130
      %p132 = scmp.ne.s32.totalorder %s124, %s127
      %p133 = scmp.eq.s32.totalorder %s20, 0
      %p134 = por %p132, %p133
      %p135 = scmp.ne.s32.totalorder %s124, %s127
      %p136 = scmp.eq.s32.totalorder %s25, 1
      %p137 = por %p135, %p136
      %p138 = scmp.ne.s32.totalorder %s127, %s128
      %p139 = scmp.eq.s32.totalorder %s25, 0
      %p140 = por %p138, %p139
      %p141 = scmp.ne.s32.totalorder %s127, %s128
      %p142 = scmp.eq.s32.totalorder %s26, 1
      %p143 = por %p141, %p142
      %p145 = scmp.ne.s32.totalorder %s128, %s144
      %p146 = scmp.eq.s32.totalorder %s26, 0
      %p147 = por %p145, %p146
      %p148 = scmp.le.s32.totalorder 1, %s20
      %p149 = scmp.lt.s32.totalorder %s20, 3
      %p150 = pnand %p148, %p149
      %p151 = pneg %p150
      // Predicated region
      $region9: #{tpu_custom_call.1} parent=5 // pred_check
        _
      $region10: #{tpu_custom_call.1} parent=5 // pred_check_branch
        %153 = sbr.rel (%p150) target = $region12
      $region11: #{tpu_custom_call.1} parent=5 // pred_region
        %s154 = ssub.s32 %s20, 1
      $region12: #{tpu_custom_call.1} parent=5 // pred_fallthru
        _
      %p155 = scmp.lt.s32.totalorder %s20, 2
      // Predicated region
      $region13: #{tpu_custom_call.1} parent=5 // pred_check
        %p156 = pneg %p155
      $region14: #{tpu_custom_call.1} parent=5 // pred_check_branch
        %158 = sbr.rel (%p156) target = $region16
      $region15: #{tpu_custom_call.1} parent=5 // pred_region
        // Predicated region
        $region17: #{tpu_custom_call.1} parent=15 // pred_check
          %p159 = pneg %p54
        $region18: #{tpu_custom_call.1} parent=15 // pred_check_branch
          %161 = sbr.rel (%p159) target = $region20
        $region19: #{tpu_custom_call.1} parent=15 // pred_region
          %s162 = sand.u32 %s44, 1
          %s163 = scalar_lea.sflag [#allocation5], %s162
          %s164 = sand.u32 %s44, 1
          %s165 = smul.addr %s164, 16
          %s166 = scalar_lea.vmem [#allocation4], %s165
          %s168 = ssub.s32 256, 256
          %169 = vsyncadd %s163, %s168
          %s170 = smul.addr %s27, 2
          %s171 = sadd.s32 %s28, %s170
          %s172 = smul.addr %s171, 128
          %s173 = scalar_lea.hbm %s1, %s172
          %s174 = sshll.u32 %s166, 4
          %s175 = int_to_ptr.vmem [resolvable:$true] %s174
          %180 = dma.hbm_to_vmem [thread:$0]  %s173, 256, %s175, %s163, 128, 128, 8
        $region20: #{tpu_custom_call.1} parent=15 // pred_fallthru
          _
        // Predicated region
        $region21: #{tpu_custom_call.1} parent=15 // pred_check
          %p181 = pneg %p80
        $region22: #{tpu_custom_call.1} parent=15 // pred_check_branch
          %183 = sbr.rel (%p181) target = $region24
        $region23: #{tpu_custom_call.1} parent=15 // pred_region
          %p184 = scmp.lt.s32.totalorder %s27, 1
          %s185 = scalar_select %p184, %s27, 1
          %s186 = scalar_lea.vmem %s2, %s185
        $region24: #{tpu_custom_call.1} parent=15 // pred_fallthru
          _
        // Predicated region
        $region25: #{tpu_custom_call.1} parent=15 // pred_check
          %p187 = pneg %p106
        $region26: #{tpu_custom_call.1} parent=15 // pred_check_branch
          %189 = sbr.rel (%p187) target = $region28
        $region27: #{tpu_custom_call.1} parent=15 // pred_region
          %p190 = scmp.lt.s32.totalorder %s27, 1
          %s191 = scalar_select %p190, %s27, 1
          %s192 = smul.addr %s191, 4
          %s193 = scalar_lea.vmem %s3, %s192
        $region28: #{tpu_custom_call.1} parent=15 // pred_fallthru
          _
      $region16: #{tpu_custom_call.1} parent=5 // pred_fallthru
        _
      %p194 = scmp.le.s32.totalorder 1, %s20
      %p195 = scmp.lt.s32.totalorder %s20, 3
      %p196 = pnand %p194, %p195
      %p197 = pneg %p196
      // Predicated region
      $region29: #{tpu_custom_call.1} parent=5 // pred_check
        _
      $region30: #{tpu_custom_call.1} parent=5 // pred_check_branch
        %199 = sbr.rel (%p196) target = $region32
      $region31: #{tpu_custom_call.1} parent=5 // pred_region
        %s200 = ssub.s32 %s20, 1
        %s201 = sand.u32 %s47, 1
        %s202 = scalar_lea.sflag [#allocation5], %s201
        %s203 = sand.u32 %s47, 1
        %s204 = smul.addr %s203, 16
        %s205 = scalar_lea.vmem [#allocation4], %s204
        // Predicated region
        $region33: #{tpu_custom_call.1} parent=31 // pred_check
          %p206 = pneg %p60
        $region34: #{tpu_custom_call.1} parent=31 // pred_check_branch
          %208 = sbr.rel (%p206) target = $region36
        $region35: #{tpu_custom_call.1} parent=31 // pred_region
          %209 = dma.done %s202, 256
        $region36: #{tpu_custom_call.1} parent=31 // pred_fallthru
          _
        %s210 = sand.u32 %s47, 1
        %s211 = scalar_lea.sflag [#allocation5], %s210
        %s212 = sand.u32 %s47, 1
        %s213 = smul.addr %s212, 16
        %s214 = scalar_lea.vmem [#allocation4], %s213
        %p215 = pneg %p60
        %p216 = pneg %p57
        %p217 = scmp.lt.s32.totalorder %s29, 1
        %s218 = scalar_select %p217, %s29, 1
        %s219 = scalar_lea.vmem %s2, %s218
        %p220 = pneg %p86
        %p221 = pneg %p83
        %p222 = scmp.lt.s32.totalorder %s29, 1
        %s223 = scalar_select %p222, %s29, 1
        %s224 = smul.addr %s223, 4
        %s225 = scalar_lea.vmem %s3, %s224
        %p226 = pneg %p112
        %p227 = pneg %p109
        %p228 = pneg %p140
        %p229 = pneg %p137
        %s230 = sand.u32 %s127, 1
        %s231 = scalar_lea.sflag [#allocation6], %s230
        %s232 = sand.u32 %s127, 1
        %s233 = smul.addr %s232, 4
        %s234 = scalar_lea.vmem [#allocation7], %s233
        %p235 = scmp.lt.s32.totalorder %s29, 1
        %s236 = scalar_select %p235, %s29, 1
        %s237 = scalar_lea.vmem %s2, %s236
        %p238 = scmp.lt.s32.totalorder %s29, 1
        %s239 = scalar_select %p238, %s29, 1
        %s240 = smul.addr %s239, 4
        %s241 = scalar_lea.vmem %s3, %s240
        %v242 = vld [vmem:[%s205] sm:$0xff]
        %v243 = vld [vmem:[%s205 + $0x8] sm:$0xff]
        %v244 = vlaneseq
        %v245 = vshrl.u32 %v244, 7
        %v246 = vadd.s32 %v245, 8
        %s247 = sld [smem:[#allocation3 + %s29]]
        %v248 = vld [vmem:[%s237] sm:$0x1]
        %v249 = vstv %s247
        %vm250 = vcmp.eq.s32.totalorder %v245, %v249
        %vm251 = vcmp.eq.s32.totalorder %v246, %v249
        %v252 = vsel %vm250, 1, 0
        %v253 = vsel %vm251, 1, 0
        %v254 = vcvt.s32.f32 %v252
        %v255 = vcvt.s32.f32 %v253
        %v256 = vmul.f32 %v242, %v254
        %v257 = vmul.f32 %v243, %v255
        %v258 = vadd.f32 %v256, %v257
        %v259 = vrot.slane %v258, 4
        %v260 = vadd.f32 %v258, %v259
        %v261 = vrot.slane %v260, 2
        %v262 = vadd.f32 %v260, %v261
        %v263 = vrot.slane %v262, 1
        %v264 = vadd.f32 %v262, %v263
        %v265 = vadd.f32 %v264, 1e-05
        %267 = vset.pattern.permute.xlu0 0
        %268 = vperm.xlu0 %267, %v248
        %v269 = vpop.permute.xlu0 %268
        %v271 = vlaneseq
        %v272 = vshrl.u32 %v271, 7
        %v273 = vsub.s32 0, %v272
        %v274 = vrot.slane %v269, %v273
        %vm275 = vcmp.lt.f32.partialorder %v265, %v274
        %v276 = vsel %vm275, 1, 0
        %v277 = vcvt.s32.f32 %v276
        %v278 = vsub.f32 1.0, %v277
        %s279 = sadd.s32 %s29, 2
        %s280 = sld [smem:[#allocation3 + %s279]]
        %v281 = vstv %s280
        %vm282 = vcmp.eq.s32.totalorder %v245, %v281
        %vm283 = vcmp.eq.s32.totalorder %v246, %v281
        %v284 = vsel %vm282, 1, 0
        %v285 = vsel %vm283, 1, 0
        %v286 = vcvt.s32.f32 %v284
        %v287 = vcvt.s32.f32 %v285
        %v288 = vmul.f32 %v242, %v286
        %v289 = vmul.f32 %v243, %v287
        %v290 = vadd.f32 %v288, %v289
        %v291 = vrot.slane %v290, 4
        %v292 = vadd.f32 %v290, %v291
        %v293 = vrot.slane %v292, 2
        %v294 = vadd.f32 %v292, %v293
        %v295 = vrot.slane %v294, 1
        %v296 = vadd.f32 %v294, %v295
        %v297 = vadd.f32 %v296, 1e-05
        %298 = vset.pattern.permute.xlu0 1
        %299 = vperm.xlu0 %298, %v248
        %v300 = vpop.permute.xlu0 %299
        %v302 = vlaneseq
        %v303 = vshrl.u32 %v302, 7
        %v304 = vsub.s32 0, %v303
        %v305 = vrot.slane %v300, %v304
        %vm306 = vcmp.lt.f32.partialorder %v297, %v305
        %v307 = vsel %vm306, 1, 0
        %v308 = vcvt.s32.f32 %v307
        %v309 = vmul.f32 %v308, %v277
        %v310 = vsub.f32 %v277, %v309
        %s311 = sadd.s32 %s29, 4
        %s312 = sld [smem:[#allocation3 + %s311]]
        %v313 = vstv %s312
        %vm314 = vcmp.eq.s32.totalorder %v245, %v313
        %vm315 = vcmp.eq.s32.totalorder %v246, %v313
        %v316 = vsel %vm314, 1, 0
        %v317 = vsel %vm315, 1, 0
        %v318 = vcvt.s32.f32 %v316
        %v319 = vcvt.s32.f32 %v317
        %v320 = vmul.f32 %v242, %v318
        %v321 = vmul.f32 %v243, %v319
        %v322 = vadd.f32 %v320, %v321
        %v323 = vrot.slane %v322, 4
        %v324 = vadd.f32 %v322, %v323
        %v325 = vrot.slane %v324, 2
        %v326 = vadd.f32 %v324, %v325
        %v327 = vrot.slane %v326, 1
        %v328 = vadd.f32 %v326, %v327
        %v329 = vadd.f32 %v328, 1e-05
        %330 = vset.pattern.permute.xlu0 2
        %331 = vperm.xlu0 %330, %v248
        %v332 = vpop.permute.xlu0 %331
        %v334 = vlaneseq
        %v335 = vshrl.u32 %v334, 7
        %v336 = vsub.s32 0, %v335
        %v337 = vrot.slane %v332, %v336
        %vm338 = vcmp.lt.f32.partialorder %v329, %v337
        %v339 = vsel %vm338, 1, 0
        %v340 = vcvt.s32.f32 %v339
        %v341 = vmul.f32 %v340, %v278
        %v342 = vsub.f32 %v278, %v341
        %v343 = vld [vmem:[%s241] sm:$0xf]
        %v344 = vmul.f32 %v343, 0.33333334
        %346 = vset.pattern.permute.xlu0 0
        %347 = vperm.xlu0 %346, %v344
        %v348 = vpop.permute.xlu0 %347
        %v350 = vmul.f32 %v348, %v309
        %v351 = vadd.f32 %v350, 0.0
        %352 = vset.pattern.permute.xlu0 1
        %353 = vperm.xlu0 %352, %v344
        %v354 = vpop.permute.xlu0 %353
        %v356 = vmul.f32 %v354, %v310
        %v357 = vadd.f32 %v351, %v356
        %358 = vset.pattern.permute.xlu0 2
        %359 = vperm.xlu0 %358, %v344
        %v360 = vpop.permute.xlu0 %359
        %v362 = vmul.f32 %v360, %v341
        %v363 = vadd.f32 %v357, %v362
        %364 = vset.pattern.permute.xlu0 3
        %365 = vperm.xlu0 %364, %v344
        %v366 = vpop.permute.xlu0 %365
        %v368 = vmul.f32 %v366, %v342
        %v369 = vadd.f32 %v363, %v368
        %s370 = sadd.s32 %s29, 6
        %s371 = sld [smem:[#allocation3 + %s370]]
        %v372 = vstv %s371
        %vm373 = vcmp.eq.s32.totalorder %v245, %v372
        %vm374 = vcmp.eq.s32.totalorder %v246, %v372
        %v375 = vsel %vm373, 1, 0
        %v376 = vsel %vm374, 1, 0
        %v377 = vcvt.s32.f32 %v375
        %v378 = vcvt.s32.f32 %v376
        %v379 = vmul.f32 %v242, %v377
        %v380 = vmul.f32 %v243, %v378
        %v381 = vadd.f32 %v379, %v380
        %v382 = vrot.slane %v381, 4
        %v383 = vadd.f32 %v381, %v382
        %v384 = vrot.slane %v383, 2
        %v385 = vadd.f32 %v383, %v384
        %v386 = vrot.slane %v385, 1
        %v387 = vadd.f32 %v385, %v386
        %v388 = vadd.f32 %v387, 1e-05
        %389 = vset.pattern.permute.xlu0 3
        %390 = vperm.xlu0 %389, %v248
        %v391 = vpop.permute.xlu0 %390
        %v393 = vlaneseq
        %v394 = vshrl.u32 %v393, 7
        %v395 = vsub.s32 0, %v394
        %v396 = vrot.slane %v391, %v395
        %vm397 = vcmp.lt.f32.partialorder %v388, %v396
        %v398 = vsel %vm397, 1, 0
        %v399 = vcvt.s32.f32 %v398
        %v400 = vsub.f32 1.0, %v399
        %s401 = sadd.s32 %s29, 8
        %s402 = sld [smem:[#allocation3 + %s401]]
        %v403 = vstv %s402
        %vm404 = vcmp.eq.s32.totalorder %v245, %v403
        %vm405 = vcmp.eq.s32.totalorder %v246, %v403
        %v406 = vsel %vm404, 1, 0
        %v407 = vsel %vm405, 1, 0
        %v408 = vcvt.s32.f32 %v406
        %v409 = vcvt.s32.f32 %v407
        %v410 = vmul.f32 %v242, %v408
        %v411 = vmul.f32 %v243, %v409
        %v412 = vadd.f32 %v410, %v411
        %v413 = vrot.slane %v412, 4
        %v414 = vadd.f32 %v412, %v413
        %v415 = vrot.slane %v414, 2
        %v416 = vadd.f32 %v414, %v415
        %v417 = vrot.slane %v416, 1
        %v418 = vadd.f32 %v416, %v417
        %v419 = vadd.f32 %v418, 1e-05
        %420 = vset.pattern.permute.xlu0 4
        %421 = vperm.xlu0 %420, %v248
        %v422 = vpop.permute.xlu0 %421
        %v424 = vlaneseq
        %v425 = vshrl.u32 %v424, 7
        %v426 = vsub.s32 0, %v425
        %v427 = vrot.slane %v422, %v426
        %vm428 = vcmp.lt.f32.partialorder %v419, %v427
        %v429 = vsel %vm428, 1, 0
        %v430 = vcvt.s32.f32 %v429
        %v431 = vmul.f32 %v430, %v399
        %v432 = vsub.f32 %v399, %v431
        %s433 = sadd.s32 %s29, 10
        %s434 = sld [smem:[#allocation3 + %s433]]
        %v435 = vstv %s434
        %vm436 = vcmp.eq.s32.totalorder %v245, %v435
        %vm437 = vcmp.eq.s32.totalorder %v246, %v435
        %v438 = vsel %vm436, 1, 0
        %v439 = vsel %vm437, 1, 0
        %v440 = vcvt.s32.f32 %v438
        %v441 = vcvt.s32.f32 %v439
        %v442 = vmul.f32 %v242, %v440
        %v443 = vmul.f32 %v243, %v441
        %v444 = vadd.f32 %v442, %v443
        %v445 = vrot.slane %v444, 4
        %v446 = vadd.f32 %v444, %v445
        %v447 = vrot.slane %v446, 2
        %v448 = vadd.f32 %v446, %v447
        %v449 = vrot.slane %v448, 1
        %v450 = vadd.f32 %v448, %v449
        %v451 = vadd.f32 %v450, 1e-05
        %452 = vset.pattern.permute.xlu0 5
        %453 = vperm.xlu0 %452, %v248
        %v454 = vpop.permute.xlu0 %453
        %v456 = vlaneseq
        %v457 = vshrl.u32 %v456, 7
        %v458 = vsub.s32 0, %v457
        %v459 = vrot.slane %v454, %v458
        %vm460 = vcmp.lt.f32.partialorder %v451, %v459
        %v461 = vsel %vm460, 1, 0
        %v462 = vcvt.s32.f32 %v461
        %v463 = vmul.f32 %v462, %v400
        %v464 = vsub.f32 %v400, %v463
        %465 = vset.pattern.permute.xlu0 4
        %466 = vperm.xlu0 %465, %v344
        %v467 = vpop.permute.xlu0 %466
        %v469 = vmul.f32 %v467, %v431
        %v470 = vadd.f32 %v369, %v469
        %471 = vset.pattern.permute.xlu0 5
        %472 = vperm.xlu0 %471, %v344
        %v473 = vpop.permute.xlu0 %472
        %v475 = vmul.f32 %v473, %v432
        %v476 = vadd.f32 %v470, %v475
        %477 = vset.pattern.permute.xlu0 6
        %478 = vperm.xlu0 %477, %v344
        %v479 = vpop.permute.xlu0 %478
        %v481 = vmul.f32 %v479, %v463
        %v482 = vadd.f32 %v476, %v481
        %483 = vset.pattern.permute.xlu0 7
        %484 = vperm.xlu0 %483, %v344
        %v485 = vpop.permute.xlu0 %484
        %v487 = vmul.f32 %v485, %v464
        %v488 = vadd.f32 %v482, %v487
        %s489 = sadd.s32 %s29, 12
        %s490 = sld [smem:[#allocation3 + %s489]]
        %v491 = vstv %s490
        %vm492 = vcmp.eq.s32.totalorder %v245, %v491
        %vm493 = vcmp.eq.s32.totalorder %v246, %v491
        %v494 = vsel %vm492, 1, 0
        %v495 = vsel %vm493, 1, 0
        %v496 = vcvt.s32.f32 %v494
        %v497 = vcvt.s32.f32 %v495
        %v498 = vmul.f32 %v242, %v496
        %v499 = vmul.f32 %v243, %v497
        %v500 = vadd.f32 %v498, %v499
        %v501 = vrot.slane %v500, 4
        %v502 = vadd.f32 %v500, %v501
        %v503 = vrot.slane %v502, 2
        %v504 = vadd.f32 %v502, %v503
        %v505 = vrot.slane %v504, 1
        %v506 = vadd.f32 %v504, %v505
        %v507 = vadd.f32 %v506, 1e-05
        %508 = vset.pattern.permute.xlu0 6
        %509 = vperm.xlu0 %508, %v248
        %v510 = vpop.permute.xlu0 %509
        %v512 = vlaneseq
        %v513 = vshrl.u32 %v512, 7
        %v514 = vsub.s32 0, %v513
        %v515 = vrot.slane %v510, %v514
        %vm516 = vcmp.lt.f32.partialorder %v507, %v515
        %v517 = vsel %vm516, 1, 0
        %v518 = vcvt.s32.f32 %v517
        %v519 = vsub.f32 1.0, %v518
        %s520 = sadd.s32 %s29, 14
        %s521 = sld [smem:[#allocation3 + %s520]]
        %v522 = vstv %s521
        %vm523 = vcmp.eq.s32.totalorder %v245, %v522
        %vm524 = vcmp.eq.s32.totalorder %v246, %v522
        %v525 = vsel %vm523, 1, 0
        %v526 = vsel %vm524, 1, 0
        %v527 = vcvt.s32.f32 %v525
        %v528 = vcvt.s32.f32 %v526
        %v529 = vmul.f32 %v242, %v527
        %v530 = vmul.f32 %v243, %v528
        %v531 = vadd.f32 %v529, %v530
        %v532 = vrot.slane %v531, 4
        %v533 = vadd.f32 %v531, %v532
        %v534 = vrot.slane %v533, 2
        %v535 = vadd.f32 %v533, %v534
        %v536 = vrot.slane %v535, 1
        %v537 = vadd.f32 %v535, %v536
        %v538 = vadd.f32 %v537, 1e-05
        %539 = vset.pattern.permute.xlu0 7
        %540 = vperm.xlu0 %539, %v248
        %v541 = vpop.permute.xlu0 %540
        %v543 = vlaneseq
        %v544 = vshrl.u32 %v543, 7
        %v545 = vsub.s32 0, %v544
        %v546 = vrot.slane %v541, %v545
        %vm547 = vcmp.lt.f32.partialorder %v538, %v546
        %v548 = vsel %vm547, 1, 0
        %v549 = vcvt.s32.f32 %v548
        %v550 = vmul.f32 %v549, %v518
        %v551 = vsub.f32 %v518, %v550
        %s552 = sadd.s32 %s29, 16
        %s553 = sld [smem:[#allocation3 + %s552]]
        %v554 = vstv %s553
        %vm555 = vcmp.eq.s32.totalorder %v245, %v554
        %vm556 = vcmp.eq.s32.totalorder %v246, %v554
        %v557 = vsel %vm555, 1, 0
        %v558 = vsel %vm556, 1, 0
        %v559 = vcvt.s32.f32 %v557
        %v560 = vcvt.s32.f32 %v558
        %v561 = vmul.f32 %v242, %v559
        %v562 = vmul.f32 %v243, %v560
        %v563 = vadd.f32 %v561, %v562
        %v564 = vrot.slane %v563, 4
        %v565 = vadd.f32 %v563, %v564
        %v566 = vrot.slane %v565, 2
        %v567 = vadd.f32 %v565, %v566
        %v568 = vrot.slane %v567, 1
        %v569 = vadd.f32 %v567, %v568
        %v570 = vadd.f32 %v569, 1e-05
        %571 = vset.pattern.permute.xlu0 8
        %572 = vperm.xlu0 %571, %v248
        %v573 = vpop.permute.xlu0 %572
        %v575 = vlaneseq
        %v576 = vshrl.u32 %v575, 7
        %v577 = vsub.s32 0, %v576
        %v578 = vrot.slane %v573, %v577
        %vm579 = vcmp.lt.f32.partialorder %v570, %v578
        %v580 = vsel %vm579, 1, 0
        %v581 = vcvt.s32.f32 %v580
        %v582 = vmul.f32 %v581, %v519
        %v583 = vsub.f32 %v519, %v582
        %584 = vset.pattern.permute.xlu0 8
        %585 = vperm.xlu0 %584, %v344
        %v586 = vpop.permute.xlu0 %585
        %v588 = vmul.f32 %v586, %v550
        %v589 = vadd.f32 %v488, %v588
        %590 = vset.pattern.permute.xlu0 9
        %591 = vperm.xlu0 %590, %v344
        %v592 = vpop.permute.xlu0 %591
        %v594 = vmul.f32 %v592, %v551
        %v595 = vadd.f32 %v589, %v594
        %596 = vset.pattern.permute.xlu0 10
        %597 = vperm.xlu0 %596, %v344
        %v598 = vpop.permute.xlu0 %597
        %v600 = vmul.f32 %v598, %v582
        %v601 = vadd.f32 %v595, %v600
        %602 = vset.pattern.permute.xlu0 11
        %603 = vperm.xlu0 %602, %v344
        %v604 = vpop.permute.xlu0 %603
        %v606 = vmul.f32 %v604, %v583
        %v607 = vadd.f32 %v601, %v606
        %608 = vst [vmem:[%s234] sm:$0xf] %v607
        %s609 = sand.u32 %s127, 1
        %s610 = scalar_lea.sflag [#allocation6], %s609
        %s611 = sand.u32 %s127, 1
        %s612 = smul.addr %s611, 4
        %s613 = scalar_lea.vmem [#allocation7], %s612
        // Predicated region
        $region37: #{tpu_custom_call.1} parent=31 // pred_check
          %p614 = pneg %p137
        $region38: #{tpu_custom_call.1} parent=31 // pred_check_branch
          %616 = sbr.rel (%p614) target = $region40
        $region39: #{tpu_custom_call.1} parent=31 // pred_region
          %s618 = ssub.s32 64, 64
          %619 = vsyncadd %s610, %s618
          %s620 = sadd.s32 %s30, %s29
          %s621 = smul.addr %s620, 64
          %s622 = scalar_lea.hbm %s4, %s621
          %s624 = sshll.u32 %s613, 4
          %s625 = int_to_ptr.vmem [resolvable:$true] %s624
          %627 = dma.vmem_to_hbm [thread:$0]  %s625, 64, %s622, %s610
        $region40: #{tpu_custom_call.1} parent=31 // pred_fallthru
          _
      $region32: #{tpu_custom_call.1} parent=5 // pred_fallthru
        _
      %p628 = scmp.le.s32.totalorder 2, %s20
      // Predicated region
      $region41: #{tpu_custom_call.1} parent=5 // pred_check
        %p629 = pneg %p628
      $region42: #{tpu_custom_call.1} parent=5 // pred_check_branch
        %631 = sbr.rel (%p629) target = $region44
      $region43: #{tpu_custom_call.1} parent=5 // pred_region
        %s632 = ssub.s32 %s20, 2
        // Predicated region
        $region45: #{tpu_custom_call.1} parent=43 // pred_check
          %p633 = pneg %p143
        $region46: #{tpu_custom_call.1} parent=43 // pred_check_branch
          %635 = sbr.rel (%p633) target = $region48
        $region47: #{tpu_custom_call.1} parent=43 // pred_region
          %s636 = sand.u32 %s128, 1
          %s637 = scalar_lea.sflag [#allocation6], %s636
          %s638 = sand.u32 %s128, 1
          %s639 = smul.addr %s638, 4
          %s640 = scalar_lea.vmem [#allocation7], %s639
          %641 = dma.done %s637, 64
        $region48: #{tpu_custom_call.1} parent=43 // pred_fallthru
          _
      $region44: #{tpu_custom_call.1} parent=5 // pred_fallthru
        _
    $region6: #{tpu_custom_call.1} parent=1 // loop_footer
      %s24 = sadd.s32 1, %s20
    $region7: #{tpu_custom_call.1} parent=1 // loop_footer_branch
      %19 = sbr.rel target = $region3
    $region8: #{tpu_custom_call.1} parent=1 // loop_exit
      _
    %642 = vsyncpa [#allocation5], 1
    %s643 = scalar_lea.sflag [#allocation5], 1
    %644 = vsyncpa %s643, 1
    %645 = vsyncpa [#allocation6], 1
    %s646 = scalar_lea.sflag [#allocation6], 1
    %647 = vsyncpa %s646, 1

</llo_original>
